<compile_context>
chip_gen: v7x
topology: tpu7x:2x2x1
jax: 0.10.0
libtpu: 0.0.40
codegen_flags: <defaults>
</compile_context>

<pallas_src>
import jax
import jax.numpy as jnp
from jax.experimental import pallas as pl
from jax.experimental.pallas import tpu as pltpu

BN_EPS = 1e-5


def _round_up(x, m):
    return ((x + m - 1) // m) * m


def _cdiv(a, b):
    return (a + b - 1) // b


def _pos_embed_kernel(x_ref, a_ref, shift_ref, w2_ref, b2_ref, o_ref):
    # x_ref:     (C_in, TN)  streamed input tile (channels-major orientation)
    # a_ref:     (F, C_in)   conv1 weight with BN scale folded in
    # shift_ref: (F, 1)      folded BN shift (conv1 bias cancels under BN)
    # w2_ref:    (F, F)      conv2 weight
    # b2_ref:    (F, 1)      conv2 bias
    # o_ref:     (F, TN)     lane-dense output tile of the final (B, F, N) array
    c_in = a_ref.shape[1]
    x = x_ref[...]
    a = a_ref[...]
    # Layer 1 on the VPU: K = C_in (=3) is far too small for the MXU; unrolled
    # broadcast multiply-adds keep the MXU free for the real matmul below.
    h = shift_ref[...] + a[:, 0:1] * x[0:1, :]
    for c in range(1, c_in):
        h = h + a[:, c:c + 1] * x[c:c + 1, :]
    r = jnp.maximum(h, 0.0)
    y = jnp.dot(w2_ref[...], r, preferred_element_type=jnp.float32) + b2_ref[...]
    o_ref[...] = y.astype(o_ref.dtype)


def position_embedding_learned(xyz, params, *, max_tile=8192):
    """xyz: (B, N, C_in) float32  ->  (B, F, N) float32 (PyTorch NCL output)."""
    B, N, C_in = xyz.shape
    w1 = params["w1"][:, :, 0].astype(jnp.float32)          # (F, C_in)
    w2 = params["w2"][:, :, 0].astype(jnp.float32)          # (F, F)
    F = w1.shape[0]
    M = B * N

    # Transpose once; both the stats prologue and the kernel stream read xt, so
    # the un-transposed X is not touched again (minimal wrapper HBM traffic).
    xt = jnp.transpose(xyz.astype(jnp.float32), (0, 2, 1))  # (B, C_in, N)

    # ---- analytic training-mode BN statistics (single-pass raw moments) ----
    mean_x = jnp.sum(xt, axis=(0, 2)) / M                    # (C_in,)
    s2 = jnp.einsum("bcn,bdn->cd", xt, xt)                   # (C_in, C_in) raw moment
    cov = s2 / M - jnp.outer(mean_x, mean_x)                 # biased covariance
    var_h = jnp.einsum("fc,cd,fd->f", w1, cov, w1)           # (F,)
    var_h = jnp.maximum(var_h, 0.0)                          # PSD up to rounding -> clamp
    eff_scale = params["bn_gamma"].astype(jnp.float32) * jax.lax.rsqrt(var_h + BN_EPS)
    a = w1 * eff_scale[:, None]                              # BN scale folded into conv1
    # conv1 bias b1 cancels exactly: shift = beta - eff_scale * (W1 @ mean_x)
    shift = (params["bn_beta"].astype(jnp.float32) - eff_scale * (w1 @ mean_x)).reshape(F, 1)
    b2 = params["b2"].reshape(F, 1).astype(jnp.float32)

    # ---- token tile selection ----
    tn = max(128, min(max_tile, _round_up(N, 128)))          # multiple of 128
    # v7x has 2 TensorCores; keep at least 2 grid steps so both get work.
    if B * _cdiv(N, tn) < 2:
        tn = max(128, min(tn, _round_up(_cdiv(N, 2), 128)))
    grid = (B, _cdiv(N, tn))                                 # ragged tail is masked by Pallas

    out = pl.pallas_call(
        _pos_embed_kernel,
        out_shape=jax.ShapeDtypeStruct((B, F, N), jnp.float32),
        grid=grid,
        in_specs=[
            pl.BlockSpec((None, C_in, tn), lambda b, n: (b, 0, n)),   # streamed X tile
            pl.BlockSpec((F, C_in), lambda b, n: (0, 0)),             # resident weights
            pl.BlockSpec((F, 1), lambda b, n: (0, 0)),
            pl.BlockSpec((F, F), lambda b, n: (0, 0)),
            pl.BlockSpec((F, 1), lambda b, n: (0, 0)),
        ],
        out_specs=pl.BlockSpec((None, F, tn), lambda b, n: (b, 0, n)),
        compiler_params=pltpu.CompilerParams(
            dimension_semantics=("parallel", "parallel"),
            vmem_limit_bytes=32 * 1024 * 1024,
        ),
    )(xt, a, shift, w2, b2)
    return out


def init_params(key, input_channel=3, num_pos_feats=32):
    """Deterministic init mirroring the module's __init__:
       Conv1d: kaiming_normal_(mode='fan_in'), bias zero.
       BatchNorm1d: weight ~ U[0,1), bias zero."""
    k1, k2, k3 = jax.random.split(key, 3)
    std1 = (2.0 / (input_channel * 1)) ** 0.5
    std2 = (2.0 / (num_pos_feats * 1)) ** 0.5
    w1 = jax.random.normal(k1, (num_pos_feats, input_channel, 1), jnp.float32) * std1
    w2 = jax.random.normal(k2, (num_pos_feats, num_pos_feats, 1), jnp.float32) * std2
    return {
        "w1": w1,
        "b1": jnp.zeros((num_pos_feats,), jnp.float32),
        "bn_gamma": jax.random.uniform(k3, (num_pos_feats,), jnp.float32),
        "bn_beta": jnp.zeros((num_pos_feats,), jnp.float32),
        "w2": w2,
        "b2": jnp.zeros((num_pos_feats,), jnp.float32),
    }


def _reference(xyz, params):
    """Plain-JAX reference of the PyTorch forward (training-mode BN, two-pass stats)."""
    B, N, C_in = xyz.shape
    F = params["w1"].shape[0]
    x = xyz.reshape(B * N, C_in).astype(jnp.float32)
    h = x @ params["w1"][:, :, 0].T + params["b1"]
    mean = h.mean(axis=0, keepdims=True)
    var = ((h - mean) ** 2).mean(axis=0, keepdims=True)
    h = (h - mean) / jnp.sqrt(var + BN_EPS) * params["bn_gamma"] + params["bn_beta"]
    h = jnp.maximum(h, 0.0)
    y = h @ params["w2"][:, :, 0].T + params["b2"]
    return jnp.transpose(y.reshape(B, N, F), (0, 2, 1))


if __name__ == "__main__":
    key = jax.random.PRNGKey(0)
    kx1, kx2, kp = jax.random.split(key, 3)

    B, C_in, F = 2, 3, 32
    params = init_params(kp, input_channel=C_in, num_pos_feats=F)

    # Case 1: N a multiple of 128 (full, unmasked tiles).
    N1 = 256
    xyz1 = jax.random.normal(kx1, (B, N1, C_in), jnp.float32)
    out1 = jax.block_until_ready(position_embedding_learned(xyz1, params))
    ref1 = _reference(xyz1, params)
    assert out1.shape == (B, F, N1), out1.shape
    assert jnp.allclose(out1, ref1, atol=1e-3, rtol=1e-3), "mismatch vs reference (aligned N)"

    # Case 2: ragged N exercising the masked-tail-block path (no pad / slice).
    N2 = 200
    xyz2 = jax.random.normal(kx2, (B, N2, C_in), jnp.float32)
    out2 = jax.block_until_ready(position_embedding_learned(xyz2, params))
    ref2 = _reference(xyz2, params)
    assert out2.shape == (B, F, N2), out2.shape
    assert jnp.allclose(out2, ref2, atol=1e-3, rtol=1e-3), "mismatch vs reference (ragged N)"

    print("KERNEL_OK")
</pallas_src>

<mosaic_0001>
module attributes {stable_mosaic.version = 11 : i64} {
  func.func @_pos_embed_kernel(%arg0: i32, %arg1: i32, %arg2: memref<1x3x256xf32, #tpu.memory_space<vmem>>, %arg3: memref<32x3xf32, #tpu.memory_space<vmem>>, %arg4: memref<32x1xf32, #tpu.memory_space<vmem>>, %arg5: memref<32x32xf32, #tpu.memory_space<vmem>>, %arg6: memref<32x1xf32, #tpu.memory_space<vmem>>, %arg7: memref<1x32x256xf32, #tpu.memory_space<vmem>>) attributes {dimension_semantics = [#tpu.dimension_semantics<parallel>, #tpu.dimension_semantics<parallel>], iteration_bounds = array<i64: 2, 1>, scalar_prefetch = 0 : i64, scratch_operands = 0 : i64, tpu.core_type = #tpu.core_type<tc>, window_params = [{transform_indices = @transform_0, window_bounds = array<i64: 1, 3, 256>}, {pipeline_mode = #tpu.pipeline_mode<synchronous>, transform_indices = @transform_1, window_bounds = array<i64: 32, 3>}, {pipeline_mode = #tpu.pipeline_mode<synchronous>, transform_indices = @transform_2, window_bounds = array<i64: 32, 1>}, {pipeline_mode = #tpu.pipeline_mode<synchronous>, transform_indices = @transform_3, window_bounds = array<i64: 32, 32>}, {pipeline_mode = #tpu.pipeline_mode<synchronous>, transform_indices = @transform_4, window_bounds = array<i64: 32, 1>}, {transform_indices = @transform_5, window_bounds = array<i64: 1, 32, 256>}]} {
    %c0 = arith.constant 0 : index
    %c0_0 = arith.constant 0 : index
    %c0_1 = arith.constant 0 : index
    %0 = vector.load %arg2[%c0, %c0_0, %c0_1] : memref<1x3x256xf32, #tpu.memory_space<vmem>>, vector<1x3x256xf32>
    %1 = vector.shape_cast %0 : vector<1x3x256xf32> to vector<3x256xf32>
    %c0_2 = arith.constant 0 : index
    %c0_3 = arith.constant 0 : index
    %2 = vector.load %arg3[%c0_2, %c0_3] : memref<32x3xf32, #tpu.memory_space<vmem>>, vector<32x3xf32>
    %c0_4 = arith.constant 0 : index
    %c0_5 = arith.constant 0 : index
    %3 = vector.load %arg4[%c0_4, %c0_5] : memref<32x1xf32, #tpu.memory_space<vmem>>, vector<32x1xf32>
    %4 = vector.extract_strided_slice %2 {offsets = [0, 0], sizes = [32, 1], strides = [1, 1]} : vector<32x3xf32> to vector<32x1xf32>
    %5 = vector.extract_strided_slice %1 {offsets = [0, 0], sizes = [1, 256], strides = [1, 1]} : vector<3x256xf32> to vector<1x256xf32>
    %6 = vector.broadcast %4 : vector<32x1xf32> to vector<32x256xf32>
    %7 = vector.broadcast %5 : vector<1x256xf32> to vector<32x256xf32>
    %8 = arith.mulf %6, %7 : vector<32x256xf32>
    %9 = vector.broadcast %3 : vector<32x1xf32> to vector<32x256xf32>
    %10 = arith.addf %9, %8 : vector<32x256xf32>
    %11 = vector.extract_strided_slice %2 {offsets = [0, 1], sizes = [32, 1], strides = [1, 1]} : vector<32x3xf32> to vector<32x1xf32>
    %12 = vector.extract_strided_slice %1 {offsets = [1, 0], sizes = [1, 256], strides = [1, 1]} : vector<3x256xf32> to vector<1x256xf32>
    %13 = vector.broadcast %11 : vector<32x1xf32> to vector<32x256xf32>
    %14 = vector.broadcast %12 : vector<1x256xf32> to vector<32x256xf32>
    %15 = arith.mulf %13, %14 : vector<32x256xf32>
    %16 = arith.addf %10, %15 : vector<32x256xf32>
    %17 = vector.extract_strided_slice %2 {offsets = [0, 2], sizes = [32, 1], strides = [1, 1]} : vector<32x3xf32> to vector<32x1xf32>
    %18 = vector.extract_strided_slice %1 {offsets = [2, 0], sizes = [1, 256], strides = [1, 1]} : vector<3x256xf32> to vector<1x256xf32>
    %19 = vector.broadcast %17 : vector<32x1xf32> to vector<32x256xf32>
    %20 = vector.broadcast %18 : vector<1x256xf32> to vector<32x256xf32>
    %21 = arith.mulf %19, %20 : vector<32x256xf32>
    %22 = arith.addf %16, %21 : vector<32x256xf32>
    %cst = arith.constant 0.000000e+00 : f32
    %23 = vector.broadcast %cst : f32 to vector<32x256xf32>
    %24 = arith.maximumf %22, %23 : vector<32x256xf32>
    %c0_6 = arith.constant 0 : index
    %c0_7 = arith.constant 0 : index
    %25 = vector.load %arg5[%c0_6, %c0_7] : memref<32x32xf32, #tpu.memory_space<vmem>>, vector<32x32xf32>
    %cst_8 = arith.constant dense<0.000000e+00> : vector<32x256xf32>
    %26 = tpu.matmul %25, %24, %cst_8 {dimension_numbers = #tpu.dot_dimension_numbers<[1], [0], [0], [1], [0, 0, 1, 1], [], []>} : vector<32x32xf32>, vector<32x256xf32>, vector<32x256xf32> -> vector<32x256xf32>
    %c0_9 = arith.constant 0 : index
    %c0_10 = arith.constant 0 : index
    %27 = vector.load %arg6[%c0_9, %c0_10] : memref<32x1xf32, #tpu.memory_space<vmem>>, vector<32x1xf32>
    %28 = vector.broadcast %27 : vector<32x1xf32> to vector<32x256xf32>
    %29 = arith.addf %26, %28 : vector<32x256xf32>
    %c0_11 = arith.constant 0 : index
    %c0_12 = arith.constant 0 : index
    %c0_13 = arith.constant 0 : index
    %30 = vector.load %arg7[%c0_11, %c0_12, %c0_13] : memref<1x32x256xf32, #tpu.memory_space<vmem>>, vector<1x32x256xf32>
    %31 = vector.shape_cast %30 : vector<1x32x256xf32> to vector<32x256xf32>
    %32 = vector.shape_cast %29 : vector<32x256xf32> to vector<1x32x256xf32>
    tpu.vector_store %arg7[%c0_11, %c0_12, %c0_13], %32 {strides = array<i32>} : memref<1x32x256xf32, #tpu.memory_space<vmem>>, vector<1x32x256xf32>,
    return
  }
  func.func @transform_0(%arg0: i32, %arg1: i32) -> (i32, i32, i32) {
    %c0_i32 = arith.constant 0 : i32
    %c0_i32_0 = arith.constant 0 : i32
    return %arg0, %c0_i32, %arg1 : i32, i32, i32
  }
  func.func @transform_1(%arg0: i32, %arg1: i32) -> (i32, i32) {
    %c0_i32 = arith.constant 0 : i32
    %c0_i32_0 = arith.constant 0 : i32
    %c0_i32_1 = arith.constant 0 : i32
    return %c0_i32, %c0_i32_0 : i32, i32
  }
  func.func @transform_2(%arg0: i32, %arg1: i32) -> (i32, i32) {
    %c0_i32 = arith.constant 0 : i32
    %c0_i32_0 = arith.constant 0 : i32
    %c0_i32_1 = arith.constant 0 : i32
    return %c0_i32, %c0_i32_0 : i32, i32
  }
  func.func @transform_3(%arg0: i32, %arg1: i32) -> (i32, i32) {
    %c0_i32 = arith.constant 0 : i32
    %c0_i32_0 = arith.constant 0 : i32
    %c0_i32_1 = arith.constant 0 : i32
    return %c0_i32, %c0_i32_0 : i32, i32
  }
  func.func @transform_4(%arg0: i32, %arg1: i32) -> (i32, i32) {
    %c0_i32 = arith.constant 0 : i32
    %c0_i32_0 = arith.constant 0 : i32
    %c0_i32_1 = arith.constant 0 : i32
    return %c0_i32, %c0_i32_0 : i32, i32
  }
  func.func @transform_5(%arg0: i32, %arg1: i32) -> (i32, i32, i32) {
    %c0_i32 = arith.constant 0 : i32
    %c0_i32_0 = arith.constant 0 : i32
    return %arg0, %c0_i32, %arg1 : i32, i32, i32
  }
}

</mosaic_0001>

<llo_original>
// kernel: tpu_custom_call.1
$region0: #{tpu_custom_call.1}
  #allocation0 [shape = 'u32[]', space=smem, size = 0x4, offset = 0x4, fixed_abs, tag = 'smem constant byte address 0x4 - core index']
  #allocation1 [shape = 'u32[144,128]{1,0:T(1,128)}', space=vmem, size = 0x12000, scoped, tag = 'internal scratch']
  %s0 = inlined_call_operand.vmem [shape: f32[2,3,256], index: 0, kind: input, shape index: {}]
  %s1 = inlined_call_operand.vmem [shape: f32[32,3], index: 1, kind: input, shape index: {}]
  %s2 = inlined_call_operand.vmem [shape: f32[32,1], index: 2, kind: input, shape index: {}]
  %s3 = inlined_call_operand.vmem [shape: f32[32,32], index: 3, kind: input, shape index: {}]
  %s4 = inlined_call_operand.vmem [shape: f32[32,1], index: 4, kind: input, shape index: {}]
  %s5 = inlined_call_operand.hbm [shape: f32[2,32,256], index: 5, kind: output, shape index: {}]
  %s6 = sld [smem:[#allocation0]]
  $region53: #{tpu_custom_call.1} parent=0
    _
  %s8 = ssub.s32 1, %s6
  %s9 = scalar_select 0, %s8, %s6
  $region1: #{tpu_custom_call.1} parent=0
    #allocation2 [shape = 'u8[65536]{0}', space=vmem, size = 0x10000, scoped, tag = 'output window, operand 0']
    #allocation3 [shape = 's32[2]{0}', space=sflag, size = 0x8, scoped, tag = 'scoped memory for tpu_custom_call.1']
    %10 = vsyncpa [#allocation3], 0
    %s11 = scalar_lea.sflag [#allocation3], 1
    %12 = vsyncpa %s11, 0
    loop: start=0, step=1, limit=4
    $region2: #{tpu_custom_call.1} parent=1 // loop_pre_header
      _
    $region3: #{tpu_custom_call.1} parent=1 // loop_header
      %s14 = sphi 0, %s18
      %p15 = scmp.ge.s32.totalorder %s14, 4
      %s21 = sphi 0, %s33
      %s22 = sphi 0, %s29
      %s23 = sphi 0, %s21
      %s24 = sphi 0, %s22
      %s25 = sphi 0, %s23
      %s26 = sphi 0, %s24
      %s38 = sphi 0, %s40
      %s41 = sphi 0, %s38
      %s42 = sphi 0, %s41
      %s58 = sphi 0, %s42
      %s62 = sphi 0, %s62
      %s64 = sphi 0, %s62
      %s65 = sphi 0, %s64
      %s79 = sphi 0, %s65
      %s83 = sphi 0, %s83
      %s85 = sphi 0, %s83
      %s86 = sphi 0, %s85
      %s100 = sphi 0, %s86
      %s104 = sphi 0, %s104
      %s106 = sphi 0, %s104
      %s107 = sphi 0, %s106
      %s121 = sphi 0, %s107
      %s125 = sphi 0, %s125
      %s127 = sphi 0, %s125
      %s128 = sphi 0, %s127
      %s142 = sphi 0, %s128
      %s150 = sphi 0, %s152
      %s153 = sphi 0, %s150
      %s154 = sphi 0, %s153
      %s170 = sphi 0, %s154
    $region4: #{tpu_custom_call.1} parent=1 // loop_header_branch
      %17 = sbr.rel (%p15) target = $region8
    $region5: #{tpu_custom_call.1} parent=1 // loop_body
      %s19 = ssub.s32 %s14, 1
      %s20 = ssub.s32 %s14, 2
      %s27 = sadd.s32 1, %s22
      %p28 = scmp.ge.s32.totalorder %s27, 1
      %s29 = scalar_select %p28, 0, %s27
      %s30 = sadd.s32 1, %s21
      %s31 = scalar_select %p28, %s30, %s21
      %p32 = scmp.ge.s32.totalorder %s31, 2
      %s33 = scalar_select %p32, 0, %s31
      %s34 = ssub.s32 %s21, %s33
      %s35 = ssub.s32 %s22, %s29
      %s36 = sor.u32 %s34, %s35
      %p37 = scmp.eq.s32.totalorder %s36, 0
      %s39 = sadd.s32 %s38, 1
      %s40 = scalar_select %p37, %s38, %s39
      %p43 = pneg %p37
      %p44 = scmp.eq.s32.totalorder %s14, 1
      %p45 = por %p43, %p44
      %p46 = scmp.ne.s32.totalorder %s38, %s41
      %p47 = scmp.eq.s32.totalorder %s14, 0
      %p48 = por %p46, %p47
      %p49 = scmp.ne.s32.totalorder %s38, %s41
      %p50 = scmp.eq.s32.totalorder %s19, 1
      %p51 = por %p49, %p50
      %p52 = scmp.ne.s32.totalorder %s41, %s42
      %p53 = scmp.eq.s32.totalorder %s19, 0
      %p54 = por %p52, %p53
      %p55 = scmp.ne.s32.totalorder %s41, %s42
      %p56 = scmp.eq.s32.totalorder %s20, 1
      %p57 = por %p55, %p56
      %p59 = scmp.ne.s32.totalorder %s42, %s58
      %p60 = scmp.eq.s32.totalorder %s20, 0
      %p61 = por %p59, %p60
      %s63 = sadd.s32 %s62, 1
      %p66 = scmp.eq.s32.totalorder %s14, 1
      %p67 = scmp.ne.s32.totalorder %s62, %s64
      %p68 = scmp.eq.s32.totalorder %s14, 0
      %p69 = por %p67, %p68
      %p70 = scmp.ne.s32.totalorder %s62, %s64
      %p71 = scmp.eq.s32.totalorder %s19, 1
      %p72 = por %p70, %p71
      %p73 = scmp.ne.s32.totalorder %s64, %s65
      %p74 = scmp.eq.s32.totalorder %s19, 0
      %p75 = por %p73, %p74
      %p76 = scmp.ne.s32.totalorder %s64, %s65
      %p77 = scmp.eq.s32.totalorder %s20, 1
      %p78 = por %p76, %p77
      %p80 = scmp.ne.s32.totalorder %s65, %s79
      %p81 = scmp.eq.s32.totalorder %s20, 0
      %p82 = por %p80, %p81
      %s84 = sadd.s32 %s83, 1
      %p87 = scmp.eq.s32.totalorder %s14, 1
      %p88 = scmp.ne.s32.totalorder %s83, %s85
      %p89 = scmp.eq.s32.totalorder %s14, 0
      %p90 = por %p88, %p89
      %p91 = scmp.ne.s32.totalorder %s83, %s85
      %p92 = scmp.eq.s32.totalorder %s19, 1
      %p93 = por %p91, %p92
      %p94 = scmp.ne.s32.totalorder %s85, %s86
      %p95 = scmp.eq.s32.totalorder %s19, 0
      %p96 = por %p94, %p95
      %p97 = scmp.ne.s32.totalorder %s85, %s86
      %p98 = scmp.eq.s32.totalorder %s20, 1
      %p99 = por %p97, %p98
      %p101 = scmp.ne.s32.totalorder %s86, %s100
      %p102 = scmp.eq.s32.totalorder %s20, 0
      %p103 = por %p101, %p102
      %s105 = sadd.s32 %s104, 1
      %p108 = scmp.eq.s32.totalorder %s14, 1
      %p109 = scmp.ne.s32.totalorder %s104, %s106
      %p110 = scmp.eq.s32.totalorder %s14, 0
      %p111 = por %p109, %p110
      %p112 = scmp.ne.s32.totalorder %s104, %s106
      %p113 = scmp.eq.s32.totalorder %s19, 1
      %p114 = por %p112, %p113
      %p115 = scmp.ne.s32.totalorder %s106, %s107
      %p116 = scmp.eq.s32.totalorder %s19, 0
      %p117 = por %p115, %p116
      %p118 = scmp.ne.s32.totalorder %s106, %s107
      %p119 = scmp.eq.s32.totalorder %s20, 1
      %p120 = por %p118, %p119
      %p122 = scmp.ne.s32.totalorder %s107, %s121
      %p123 = scmp.eq.s32.totalorder %s20, 0
      %p124 = por %p122, %p123
      %s126 = sadd.s32 %s125, 1
      %p129 = scmp.eq.s32.totalorder %s14, 1
      %p130 = scmp.ne.s32.totalorder %s125, %s127
      %p131 = scmp.eq.s32.totalorder %s14, 0
      %p132 = por %p130, %p131
      %p133 = scmp.ne.s32.totalorder %s125, %s127
      %p134 = scmp.eq.s32.totalorder %s19, 1
      %p135 = por %p133, %p134
      %p136 = scmp.ne.s32.totalorder %s127, %s128
      %p137 = scmp.eq.s32.totalorder %s19, 0
      %p138 = por %p136, %p137
      %p139 = scmp.ne.s32.totalorder %s127, %s128
      %p140 = scmp.eq.s32.totalorder %s20, 1
      %p141 = por %p139, %p140
      %p143 = scmp.ne.s32.totalorder %s128, %s142
      %p144 = scmp.eq.s32.totalorder %s20, 0
      %p145 = por %p143, %p144
      %s146 = ssub.s32 %s21, %s33
      %s147 = ssub.s32 %s22, %s29
      %s148 = sor.u32 %s146, %s147
      %p149 = scmp.eq.s32.totalorder %s148, 0
      %s151 = sadd.s32 %s150, 1
      %s152 = scalar_select %p149, %s150, %s151
      %p155 = pneg %p149
      %p156 = scmp.eq.s32.totalorder %s14, 1
      %p157 = por %p155, %p156
      %p158 = scmp.ne.s32.totalorder %s150, %s153
      %p159 = scmp.eq.s32.totalorder %s14, 0
      %p160 = por %p158, %p159
      %p161 = scmp.ne.s32.totalorder %s150, %s153
      %p162 = scmp.eq.s32.totalorder %s19, 1
      %p163 = por %p161, %p162
      %p164 = scmp.ne.s32.totalorder %s153, %s154
      %p165 = scmp.eq.s32.totalorder %s19, 0
      %p166 = por %p164, %p165
      %p167 = scmp.ne.s32.totalorder %s153, %s154
      %p168 = scmp.eq.s32.totalorder %s20, 1
      %p169 = por %p167, %p168
      %p171 = scmp.ne.s32.totalorder %s154, %s170
      %p172 = scmp.eq.s32.totalorder %s20, 0
      %p173 = por %p171, %p172
      %p174 = scmp.le.s32.totalorder 1, %s14
      %p175 = scmp.lt.s32.totalorder %s14, 3
      %p176 = pnand %p174, %p175
      %p177 = pneg %p176
      // Predicated region
      $region9: #{tpu_custom_call.1} parent=5 // pred_check
        _
      $region10: #{tpu_custom_call.1} parent=5 // pred_check_branch
        %179 = sbr.rel (%p176) target = $region12
      $region11: #{tpu_custom_call.1} parent=5 // pred_region
        %s180 = ssub.s32 %s14, 1
        // Predicated region
        $region13: #{tpu_custom_call.1} parent=11 // pred_check
          %p181 = pneg %p75
        $region14: #{tpu_custom_call.1} parent=11 // pred_check_branch
          %183 = sbr.rel (%p181) target = $region16
        $region15: #{tpu_custom_call.1} parent=11 // pred_region
          _
        $region16: #{tpu_custom_call.1} parent=11 // pred_fallthru
          _
        // Predicated region
        $region17: #{tpu_custom_call.1} parent=11 // pred_check
          %p184 = pneg %p96
        $region18: #{tpu_custom_call.1} parent=11 // pred_check_branch
          %186 = sbr.rel (%p184) target = $region20
        $region19: #{tpu_custom_call.1} parent=11 // pred_region
          _
        $region20: #{tpu_custom_call.1} parent=11 // pred_fallthru
          _
        // Predicated region
        $region21: #{tpu_custom_call.1} parent=11 // pred_check
          %p187 = pneg %p117
        $region22: #{tpu_custom_call.1} parent=11 // pred_check_branch
          %189 = sbr.rel (%p187) target = $region24
        $region23: #{tpu_custom_call.1} parent=11 // pred_region
          _
        $region24: #{tpu_custom_call.1} parent=11 // pred_fallthru
          _
        // Predicated region
        $region25: #{tpu_custom_call.1} parent=11 // pred_check
          %p190 = pneg %p138
        $region26: #{tpu_custom_call.1} parent=11 // pred_check_branch
          %192 = sbr.rel (%p190) target = $region28
        $region27: #{tpu_custom_call.1} parent=11 // pred_region
          _
        $region28: #{tpu_custom_call.1} parent=11 // pred_fallthru
          _
      $region12: #{tpu_custom_call.1} parent=5 // pred_fallthru
        _
      %p193 = scmp.lt.s32.totalorder %s14, 2
      // Predicated region
      $region29: #{tpu_custom_call.1} parent=5 // pred_check
        %p194 = pneg %p193
      $region30: #{tpu_custom_call.1} parent=5 // pred_check_branch
        %196 = sbr.rel (%p194) target = $region32
      $region31: #{tpu_custom_call.1} parent=5 // pred_region
        // Predicated region
        $region33: #{tpu_custom_call.1} parent=31 // pred_check
          %p197 = pneg %p48
        $region34: #{tpu_custom_call.1} parent=31 // pred_check_branch
          %199 = sbr.rel (%p197) target = $region36
        $region35: #{tpu_custom_call.1} parent=31 // pred_region
          %s200 = smul.u32 2, %s22
          %p201 = scmp.lt.s32.totalorder %s21, 1
          %s202 = scalar_select %p201, %s21, 1
          %p203 = scmp.lt.s32.totalorder %s200, 1
          %s204 = scalar_select %p203, %s200, 1
          %s205 = smul.addr %s202, 2
          %s206 = sadd.s32 %s204, %s205
          %s207 = smul.addr %s206, 4
          %s208 = scalar_lea.vmem %s0, %s207
          %s209 = smul.u32 2, %s22
        $region36: #{tpu_custom_call.1} parent=31 // pred_fallthru
          _
      $region32: #{tpu_custom_call.1} parent=5 // pred_fallthru
        _
      %p210 = scmp.le.s32.totalorder 1, %s14
      %p211 = scmp.lt.s32.totalorder %s14, 3
      %p212 = pnand %p210, %p211
      %p213 = pneg %p212
      // Predicated region
      $region37: #{tpu_custom_call.1} parent=5 // pred_check
        _
      $region38: #{tpu_custom_call.1} parent=5 // pred_check_branch
        %215 = sbr.rel (%p212) target = $region40
      $region39: #{tpu_custom_call.1} parent=5 // pred_region
        %s216 = ssub.s32 %s14, 1
        %s217 = smul.u32 2, %s24
        %p218 = scmp.lt.s32.totalorder %s23, 1
        %s219 = scalar_select %p218, %s23, 1
        %p220 = scmp.lt.s32.totalorder %s217, 1
        %s221 = scalar_select %p220, %s217, 1
        %s222 = smul.addr %s219, 2
        %s223 = sadd.s32 %s221, %s222
        %s224 = smul.addr %s223, 4
        %s225 = scalar_lea.vmem %s0, %s224
        %p226 = pneg %p54
        %p227 = pneg %p51
        %p228 = pneg %p75
        %p229 = pneg %p72
        %p230 = pneg %p96
        %p231 = pneg %p93
        %p232 = pneg %p117
        %p233 = pneg %p114
        %p234 = pneg %p138
        %p235 = pneg %p135
        %p236 = pneg %p166
        %p237 = pneg %p163
        %s238 = sand.u32 %s153, 1
        %s239 = scalar_lea.sflag [#allocation3], %s238
        %s240 = sand.u32 %s153, 1
        %s241 = smul.addr %s240, 64
        %s242 = scalar_lea.vmem [#allocation2], %s241
        %s243 = smul.u32 2, %s24
        %p244 = scmp.lt.s32.totalorder %s23, 1
        %s245 = scalar_select %p244, %s23, 1
        %p246 = scmp.lt.s32.totalorder %s243, 1
        %s247 = scalar_select %p246, %s243, 1
        %s248 = smul.addr %s245, 2
        %s249 = sadd.s32 %s247, %s248
        %s250 = smul.addr %s249, 4
        %s251 = scalar_lea.vmem %s0, %s250
        %s252 = smul.u32 2, %s24
        %s253 = smul.u32 2, %s24
        %v254 = vld [vmem:[%s251] sm:$0x77]
        %v255 = vld [vmem:[%s1] sm:$0xff]
        %v256 = vld [vmem:[%s1 + $0x8] sm:$0xff]
        %v257 = vld [vmem:[%s1 + $0x10] sm:$0xff]
        %v258 = vld [vmem:[%s1 + $0x18] sm:$0xff]
        %v259 = vld [vmem:[%s2] sm:$0xff]
        %v260 = vld [vmem:[%s2 + $0x8] sm:$0xff]
        %v261 = vld [vmem:[%s2 + $0x10] sm:$0xff]
        %v262 = vld [vmem:[%s2 + $0x18] sm:$0xff]
        %264 = vset.pattern.permute.xlu0 0
        %265 = vperm.xlu0 %264, %v255
        %v266 = vpop.permute.xlu0 %265
        %269 = vset.pattern.permute.xlu0 0
        %270 = vperm.xlu0 %269, %v256
        %v271 = vpop.permute.xlu0 %270
        %274 = vset.pattern.permute.xlu0 0
        %275 = vperm.xlu0 %274, %v257
        %v276 = vpop.permute.xlu0 %275
        %279 = vset.pattern.permute.xlu0 0
        %280 = vperm.xlu0 %279, %v258
        %v281 = vpop.permute.xlu0 %280
        %v284 = vlaneseq
        %v285 = vshrl.u32 %v284, 7
        %v286 = vsub.s32 0, %v285
        %v287 = vrot.slane %v254, %v286
        %v288 = vlaneseq
        %v289 = vshrl.u32 %v288, 7
        %v290 = vsub.s32 4, %v289
        %v291 = vrot.slane %v254, %v290
        %v294 = vlaneseq
        %v295 = vshrl.u32 %v294, 7
        %v296 = vsub.s32 0, %v295
        %v297 = vrot.slane %v287, %v296
        %v298 = vlaneseq
        %v299 = vshrl.u32 %v298, 7
        %v300 = vsub.s32 0, %v299
        %v301 = vrot.slane %v291, %v300
        %v302 = vmul.f32 %v266, %v297
        %v303 = vmul.f32 %v266, %v301
        %v304 = vmul.f32 %v271, %v297
        %v305 = vmul.f32 %v271, %v301
        %v306 = vmul.f32 %v276, %v297
        %v307 = vmul.f32 %v276, %v301
        %v308 = vmul.f32 %v281, %v297
        %v309 = vmul.f32 %v281, %v301
        %311 = vset.pattern.permute.xlu0 0
        %312 = vperm.xlu0 %311, %v259
        %v313 = vpop.permute.xlu0 %312
        %316 = vset.pattern.permute.xlu0 0
        %317 = vperm.xlu0 %316, %v260
        %v318 = vpop.permute.xlu0 %317
        %321 = vset.pattern.permute.xlu0 0
        %322 = vperm.xlu0 %321, %v261
        %v323 = vpop.permute.xlu0 %322
        %326 = vset.pattern.permute.xlu0 0
        %327 = vperm.xlu0 %326, %v262
        %v328 = vpop.permute.xlu0 %327
        %v330 = vadd.f32 %v313, %v302
        %v331 = vadd.f32 %v313, %v303
        %v332 = vadd.f32 %v318, %v304
        %v333 = vadd.f32 %v318, %v305
        %v334 = vadd.f32 %v323, %v306
        %v335 = vadd.f32 %v323, %v307
        %v336 = vadd.f32 %v328, %v308
        %v337 = vadd.f32 %v328, %v309
        %338 = vset.pattern.permute.xlu0 1
        %339 = vperm.xlu0 %338, %v255
        %v340 = vpop.permute.xlu0 %339
        %342 = vset.pattern.permute.xlu0 1
        %343 = vperm.xlu0 %342, %v256
        %v344 = vpop.permute.xlu0 %343
        %346 = vset.pattern.permute.xlu0 1
        %347 = vperm.xlu0 %346, %v257
        %v348 = vpop.permute.xlu0 %347
        %350 = vset.pattern.permute.xlu0 1
        %351 = vperm.xlu0 %350, %v258
        %v352 = vpop.permute.xlu0 %351
        %v354 = vlaneseq
        %v355 = vshrl.u32 %v354, 7
        %v356 = vsub.s32 1, %v355
        %v357 = vrot.slane %v254, %v356
        %v358 = vlaneseq
        %v359 = vshrl.u32 %v358, 7
        %v360 = vsub.s32 5, %v359
        %v361 = vrot.slane %v254, %v360
        %v364 = vlaneseq
        %v365 = vshrl.u32 %v364, 7
        %v366 = vsub.s32 1, %v365
        %v367 = vrot.slane %v357, %v366
        %v368 = vlaneseq
        %v369 = vshrl.u32 %v368, 7
        %v370 = vsub.s32 1, %v369
        %v371 = vrot.slane %v361, %v370
        %v372 = vmul.f32 %v340, %v367
        %v373 = vmul.f32 %v340, %v371
        %v374 = vmul.f32 %v344, %v367
        %v375 = vmul.f32 %v344, %v371
        %v376 = vmul.f32 %v348, %v367
        %v377 = vmul.f32 %v348, %v371
        %v378 = vmul.f32 %v352, %v367
        %v379 = vmul.f32 %v352, %v371
        %v380 = vadd.f32 %v330, %v372
        %v381 = vadd.f32 %v331, %v373
        %v382 = vadd.f32 %v332, %v374
        %v383 = vadd.f32 %v333, %v375
        %v384 = vadd.f32 %v334, %v376
        %v385 = vadd.f32 %v335, %v377
        %v386 = vadd.f32 %v336, %v378
        %v387 = vadd.f32 %v337, %v379
        %388 = vset.pattern.permute.xlu0 2
        %389 = vperm.xlu0 %388, %v255
        %v390 = vpop.permute.xlu0 %389
        %392 = vset.pattern.permute.xlu0 2
        %393 = vperm.xlu0 %392, %v256
        %v394 = vpop.permute.xlu0 %393
        %396 = vset.pattern.permute.xlu0 2
        %397 = vperm.xlu0 %396, %v257
        %v398 = vpop.permute.xlu0 %397
        %400 = vset.pattern.permute.xlu0 2
        %401 = vperm.xlu0 %400, %v258
        %v402 = vpop.permute.xlu0 %401
        %v404 = vlaneseq
        %v405 = vshrl.u32 %v404, 7
        %v406 = vsub.s32 2, %v405
        %v407 = vrot.slane %v254, %v406
        %v408 = vlaneseq
        %v409 = vshrl.u32 %v408, 7
        %v410 = vsub.s32 6, %v409
        %v411 = vrot.slane %v254, %v410
        %v414 = vlaneseq
        %v415 = vshrl.u32 %v414, 7
        %v416 = vsub.s32 2, %v415
        %v417 = vrot.slane %v407, %v416
        %v418 = vlaneseq
        %v419 = vshrl.u32 %v418, 7
        %v420 = vsub.s32 2, %v419
        %v421 = vrot.slane %v411, %v420
        %v422 = vmul.f32 %v390, %v417
        %v423 = vmul.f32 %v390, %v421
        %v424 = vmul.f32 %v394, %v417
        %v425 = vmul.f32 %v394, %v421
        %v426 = vmul.f32 %v398, %v417
        %v427 = vmul.f32 %v398, %v421
        %v428 = vmul.f32 %v402, %v417
        %v429 = vmul.f32 %v402, %v421
        %v430 = vadd.f32 %v380, %v422
        %v431 = vadd.f32 %v381, %v423
        %v432 = vadd.f32 %v382, %v424
        %v433 = vadd.f32 %v383, %v425
        %v434 = vadd.f32 %v384, %v426
        %v435 = vadd.f32 %v385, %v427
        %v436 = vadd.f32 %v386, %v428
        %v437 = vadd.f32 %v387, %v429
        %v438 = vmax.f32 %v430, 0.0
        %v439 = vmax.f32 %v431, 0.0
        %v440 = vmax.f32 %v432, 0.0
        %v441 = vmax.f32 %v433, 0.0
        %v442 = vmax.f32 %v434, 0.0
        %v443 = vmax.f32 %v435, 0.0
        %v444 = vmax.f32 %v436, 0.0
        %v445 = vmax.f32 %v437, 0.0
        %v446 = vld [vmem:[%s3] sm:$0xff]
        %v447 = vld [vmem:[%s3 + $0x8] sm:$0xff]
        %v448 = vld [vmem:[%s3 + $0x10] sm:$0xff]
        %v449 = vld [vmem:[%s3 + $0x18] sm:$0xff]
        %v450 = vld [vmem:[%s4] sm:$0xff]
        %v451 = vld [vmem:[%s4 + $0x8] sm:$0xff]
        %v452 = vld [vmem:[%s4 + $0x10] sm:$0xff]
        %v453 = vld [vmem:[%s4 + $0x18] sm:$0xff]
        %455 = vset.pattern.permute.xlu0 0
        %456 = vperm.xlu0 %455, %v450
        %v457 = vpop.permute.xlu0 %456
        %460 = vset.pattern.permute.xlu0 0
        %461 = vperm.xlu0 %460, %v451
        %v462 = vpop.permute.xlu0 %461
        %465 = vset.pattern.permute.xlu0 0
        %466 = vperm.xlu0 %465, %v452
        %v467 = vpop.permute.xlu0 %466
        %470 = vset.pattern.permute.xlu0 0
        %471 = vperm.xlu0 %470, %v453
        %v472 = vpop.permute.xlu0 %471
        %vm474 = vcmask 261120
        %v476 = vsel %vm474, %v446, 0
        %v479 = vsel %vm474, %v447, 0
        %v482 = vsel %vm474, %v448, 0
        %v485 = vsel %vm474, %v449, 0
        %487 = vmatprep.subr.mxu0 %v439
        %488 = vmatpush1.msra.mxu0 %v438
        %489 = vmatprep.subr.mxu0 %v441
        %490 = vmatpush1.msra.mxu0 %v440
        %491 = vmatprep.subr.mxu0 %v443
        %492 = vmatpush1.msra.mxu0 %v442
        %493 = vmatprep.subr.mxu0 %v445
        %494 = vmatpush1.msra.mxu0 %v444
        %495 = vmatprep.subr.mxu0 0.0
        %496 = vmatpush1.msra.mxu0 0.0
        %497 = vmatprep.subr.mxu0 0.0
        %498 = vmatpush1.msra.mxu0 0.0
        %499 = vmatprep.subr.mxu0 0.0
        %500 = vmatpush1.msra.mxu0 0.0
        %501 = vmatprep.subr.mxu0 0.0
        %502 = vmatpush1.msra.mxu0 0.0
        %503 = vmatprep.subr.mxu0 0.0
        %504 = vmatpush1.msra.mxu0 0.0
        %505 = vmatprep.subr.mxu0 0.0
        %506 = vmatpush1.msra.mxu0 0.0
        %507 = vmatprep.subr.mxu0 0.0
        %508 = vmatpush1.msra.mxu0 0.0
        %509 = vmatprep.subr.mxu0 0.0
        %510 = vmatpush1.msra.mxu0 0.0
        %511 = vmatprep.subr.mxu0 0.0
        %512 = vmatpush1.msra.mxu0 0.0
        %513 = vmatprep.subr.mxu0 0.0
        %514 = vmatpush1.msra.mxu0 0.0
        %515 = vmatprep.subr.mxu0 0.0
        %516 = vmatpush1.msra.mxu0 0.0
        %517 = vmatprep.subr.mxu0 0.0
        %518 = vmatpush1.msra.mxu0 0.0
        %519 = vmatprep.subr.mxu0 0.0
        %520 = vmatpush1.msra.mxu0 0.0
        %521 = vmatprep.subr.mxu0 0.0
        %522 = vmatpush1.msra.mxu0 0.0
        %523 = vmatprep.subr.mxu0 0.0
        %524 = vmatpush1.msra.mxu0 0.0
        %525 = vmatprep.subr.mxu0 0.0
        %526 = vmatpush1.msra.mxu0 0.0
        %527 = vmatprep.subr.mxu0 0.0
        %528 = vmatpush1.msra.mxu0 0.0
        %529 = vmatprep.subr.mxu0 0.0
        %530 = vmatpush1.msra.mxu0 0.0
        %531 = vmatprep.subr.mxu0 0.0
        %532 = vmatpush1.msra.mxu0 0.0
        %533 = vmatprep.subr.mxu0 0.0
        %534 = vmatpush1.msra.mxu0 0.0
        %535 = vmatprep.subr.mxu0 0.0
        %536 = vmatpush1.msra.mxu0 0.0
        %537 = vmatprep.subr.mxu0 0.0
        %538 = vmatpush1.msra.mxu0 0.0
        %539 = vmatprep.subr.mxu0 0.0
        %540 = vmatpush1.msra.mxu0 0.0
        %541 = vmatprep.subr.mxu0 0.0
        %542 = vmatpush1.msra.mxu0 0.0
        %543 = vmatprep.subr.mxu0 0.0
        %544 = vmatpush1.msra.mxu0 0.0
        %545 = vmatprep.subr.mxu0 0.0
        %546 = vmatpush1.msra.mxu0 0.0
        %547 = vmatprep.subr.mxu0 0.0
        %548 = vmatpush1.msra.mxu0 0.0
        %549 = vmatprep.subr.mxu0 0.0
        %550 = vmatpush1.msra.mxu0 0.0
        %551 = vmatprep.mubr.f32.mxu0 0.0
        %552 = vmatmul.mubr.f32.gmra.mrb[0].mxu0 %v476
        %v553 = vpop.f32.mrb[0].mxu0
        %v554 = vadd.f32 %v457, %v553
        %v555 = vpop.f32.mrb[0].mxu0
        %v556 = vadd.f32 %v457, %v555
        %557 = vmatprep.mubr.f32.mxu0 0.0
        %558 = vmatmul.mubr.f32.gmra.mrb[0].mxu0 %v479
        %v559 = vpop.f32.mrb[0].mxu0
        %v560 = vadd.f32 %v462, %v559
        %v561 = vpop.f32.mrb[0].mxu0
        %v562 = vadd.f32 %v462, %v561
        %563 = vmatprep.mubr.f32.mxu0 0.0
        %564 = vmatmul.mubr.f32.gmra.mrb[0].mxu0 %v482
        %v565 = vpop.f32.mrb[0].mxu0
        %v566 = vadd.f32 %v467, %v565
        %v567 = vpop.f32.mrb[0].mxu0
        %v568 = vadd.f32 %v467, %v567
        %569 = vmatprep.mubr.f32.mxu0 0.0
        %570 = vmatmul.mubr.f32.gmra.mrb[0].mxu0 %v485
        %v571 = vpop.f32.mrb[0].mxu0
        %v572 = vadd.f32 %v472, %v571
        %v573 = vpop.f32.mrb[0].mxu0
        %v574 = vadd.f32 %v472, %v573
        %575 = vdwg.mxu0
        %576 = vst [vmem:[%s242] sm:$0xff] %v554
        %577 = vst [vmem:[%s242 + $0x8] sm:$0xff] %v556
        %578 = vst [vmem:[%s242 + $0x10] sm:$0xff] %v560
        %579 = vst [vmem:[%s242 + $0x18] sm:$0xff] %v562
        %580 = vst [vmem:[%s242 + $0x20] sm:$0xff] %v566
        %581 = vst [vmem:[%s242 + $0x28] sm:$0xff] %v568
        %582 = vst [vmem:[%s242 + $0x30] sm:$0xff] %v572
        %583 = vst [vmem:[%s242 + $0x38] sm:$0xff] %v574
        %s584 = sand.u32 %s153, 1
        %s585 = scalar_lea.sflag [#allocation3], %s584
        %s586 = sand.u32 %s153, 1
        %s587 = smul.addr %s586, 64
        %s588 = scalar_lea.vmem [#allocation2], %s587
        // Predicated region
        $region41: #{tpu_custom_call.1} parent=39 // pred_check
          %p589 = pneg %p163
        $region42: #{tpu_custom_call.1} parent=39 // pred_check_branch
          %591 = sbr.rel (%p589) target = $region44
        $region43: #{tpu_custom_call.1} parent=39 // pred_region
          %s592 = smul.u32 2, %s24
          %s594 = ssub.s32 1024, 1024
          %595 = vsyncadd %s585, %s594
          %s596 = smul.addr %s23, 8
          %s597 = sadd.s32 %s592, %s596
          %s598 = smul.addr %s597, 128
          %s599 = scalar_lea.hbm %s5, %s598
          %s600 = sshll.u32 %s588, 4
          %s601 = int_to_ptr.vmem [resolvable:$true] %s600
          %606 = dma.vmem_to_hbm [thread:$0]  %s601, 1024, %s599, %s585, 256, 256, 16
        $region44: #{tpu_custom_call.1} parent=39 // pred_fallthru
          _
      $region40: #{tpu_custom_call.1} parent=5 // pred_fallthru
        _
      %p607 = scmp.le.s32.totalorder 2, %s14
      // Predicated region
      $region45: #{tpu_custom_call.1} parent=5 // pred_check
        %p608 = pneg %p607
      $region46: #{tpu_custom_call.1} parent=5 // pred_check_branch
        %610 = sbr.rel (%p608) target = $region48
      $region47: #{tpu_custom_call.1} parent=5 // pred_region
        %s611 = ssub.s32 %s14, 2
        // Predicated region
        $region49: #{tpu_custom_call.1} parent=47 // pred_check
          %p612 = pneg %p169
        $region50: #{tpu_custom_call.1} parent=47 // pred_check_branch
          %614 = sbr.rel (%p612) target = $region52
        $region51: #{tpu_custom_call.1} parent=47 // pred_region
          %s615 = sand.u32 %s154, 1
          %s616 = scalar_lea.sflag [#allocation3], %s615
          %s617 = sand.u32 %s154, 1
          %s618 = smul.addr %s617, 64
          %s619 = scalar_lea.vmem [#allocation2], %s618
          %620 = dma.done %s616, 1024
        $region52: #{tpu_custom_call.1} parent=47 // pred_fallthru
          _
      $region48: #{tpu_custom_call.1} parent=5 // pred_fallthru
        _
    $region6: #{tpu_custom_call.1} parent=1 // loop_footer
      %s18 = sadd.s32 1, %s14
    $region7: #{tpu_custom_call.1} parent=1 // loop_footer_branch
      %13 = sbr.rel target = $region3
    $region8: #{tpu_custom_call.1} parent=1 // loop_exit
      _
    %621 = vsyncpa [#allocation3], 1
    %s622 = scalar_lea.sflag [#allocation3], 1
    %623 = vsyncpa %s622, 1

</llo_original>
